<compile_context>
chip_gen: v7x
topology: tpu7x:2x2x1
jax: 0.10.0
libtpu: 0.0.40
codegen_flags: <defaults>
</compile_context>

<pallas_src>
import math

import jax
import jax.numpy as jnp
import numpy as np
from jax.experimental import pallas as pl
from jax.experimental.pallas import tpu as pltpu


# Packed fixed-table layout (one 128-row lane tile).  Feature ranges are spaced
# so an out-of-range index lands in zero padding instead of another feature:
#   rows [0,24) hour, [32,39) weekday, [40,71) day, [72,84) month, rest zero.
_TIME_ROWS_PAD = 128
_HOUR_OFF, _WEEKDAY_OFF, _DAY_OFF, _MONTH_OFF = 0, 32, 40, 72


# ----------------------------------------------------------------------------
# Parameter / table construction (deterministic host-side glue)
# ----------------------------------------------------------------------------
def sinusoid_table(n_pos: int, d_model: int) -> np.ndarray:
    """Same formula as PositionalEncoding / FixedEmbedding in the PyTorch code."""
    pos = np.arange(n_pos, dtype=np.float32)[:, None]
    div = np.exp(np.arange(0, d_model, 2, dtype=np.float32)
                 * -(math.log(10000.0) / d_model))
    tab = np.zeros((n_pos, d_model), dtype=np.float32)
    tab[:, 0::2] = np.sin(pos * div)
    tab[:, 1::2] = np.cos(pos * div)
    return tab


def _vmem_capacity_bytes() -> int:
    """Best-effort per-core VMEM capacity; conservative fallback = 64 MiB (v7x)."""
    try:
        info = pltpu.get_tpu_info()
        for attr in ("vmem_capacity_bytes", "vmem_bytes", "vmem_size_bytes"):
            v = getattr(info, attr, None)
            if v:
                return int(v)
    except Exception:
        pass
    return 64 << 20


def _pick_tiles(B: int, T: int, D: int, block_budget_bytes: int):
    """Pick (bB, tT) so the (bB*tT, D) f32 block stays within block_budget_bytes.

    tT = largest multiple-of-8 divisor of T under the row budget (full divisor
    search, not powers of two).  bB widens the batch block with the remaining
    budget (fewer grid steps, larger matmul M, larger lane-dense stores).
    """
    row_bytes = 4 * D
    budget_rows = max(8, block_budget_bytes // row_bytes)
    if T % 8 != 0:
        return 1, T                      # single full-length (ragged) time tile
    tT = 8
    cand = 8
    while cand <= T and cand <= budget_rows:
        if T % cand == 0:
            tT = cand
        cand += 8
    bB = 1
    for c in range(1, B + 1):
        if B % c == 0 and c * tT <= budget_rows:
            bB = c
    return bB, tT


# ----------------------------------------------------------------------------
# Pallas kernels
# ----------------------------------------------------------------------------
def _time_feature_emb(idx_ref, ttab_ref, rows):
    """Fixed time-feature embedding as a one-hot (rows,128)@(128,D) MXU matmul.

    idx_ref : (bB, tT, 4) int32 -- offsets pre-applied so the four features
              index disjoint row ranges of the packed table (OR == sum of one-hots).
    ttab_ref: (128, D) bf16 packed [hour; weekday; day; month; zeros] table.
    """
    idx = idx_ref[...].reshape(rows, 4)
    lanes = jax.lax.broadcasted_iota(jnp.int32, (rows, _TIME_ROWS_PAD), 1)
    onehot = ((lanes == idx[:, 0:1]) | (lanes == idx[:, 1:2]) |
              (lanes == idx[:, 2:3]) | (lanes == idx[:, 3:4]))
    return jnp.dot(onehot.astype(jnp.bfloat16), ttab_ref[...],
                   preferred_element_type=jnp.float32)           # (rows, D) f32


def _embed_conv_kernel(xc_ref, w_ref, pe_ref, ttab_ref, idx_ref, o_ref):
    """One (t-tile, batch-block): circular conv1d(k=3) + pos-enc(+bias) + time-enc.

    xc_ref : (bB, tT, 3C) bf16  [x[t-1] | x[t] | x[t+1]] (circularly pre-shifted)
    w_ref  : (3C, D)      bf16  flattened conv taps
    pe_ref : (tT, D)      f32   positional encoding tile with conv bias folded in
    ttab_ref:(128, D)     bf16  packed fixed time-feature tables
    idx_ref: (bB, tT, 4)  int32 offset-adjusted time-feature indices
    o_ref  : (bB, tT, D)
    """
    bB, tT, D = o_ref.shape
    rows = bB * tT
    xc = xc_ref[...].reshape(rows, xc_ref.shape[-1])              # (rows, 3C)
    y = jnp.dot(xc, w_ref[...], preferred_element_type=jnp.float32)
    y = y + _time_feature_emb(idx_ref, ttab_ref, rows)            # (rows, D)
    o_ref[...] = (y.reshape(bB, tT, D) + pe_ref[...][None]).astype(o_ref.dtype)


def _embed_skip_kernel(x_ref, pe_ref, ttab_ref, idx_ref, o_ref):
    """skipValueEmbed path (c_in == d_model): additive encodings only."""
    bB, tT, D = o_ref.shape
    rows = bB * tT
    te = _time_feature_emb(idx_ref, ttab_ref, rows).reshape(bB, tT, D)
    o_ref[...] = (x_ref[...].astype(jnp.float32) + pe_ref[...][None] + te
                  ).astype(o_ref.dtype)


# ----------------------------------------------------------------------------
# Wrapper
# ----------------------------------------------------------------------------
class DataEmbeddingPallas:
    def __init__(self, d_model: int, c_in: int, dropout: float,
                 max_len: int = 5000, out_dtype=jnp.float32):
        self.d_model = d_model
        self.c_in = c_in
        self.max_len = max_len
        self.skip_value_embed = (c_in == d_model)
        self.dropout = dropout                      # identity (eval mode)
        self.out_dtype = out_dtype                  # bf16 halves the output HBM stream

        # ValueEmbedding Conv1d(c_in, d_model, k=3, padding_mode='circular') weights,
        # pre-flattened to (3*c_in, d_model): rows [0:C) multiply x[t-1], [C:2C) x[t],
        # [2C:3C) x[t+1].  Stored bf16 (MXU operand).
        key = jax.random.PRNGKey(0)
        k_w, k_b = jax.random.split(key)
        bound = 1.0 / math.sqrt(3 * c_in)
        self.w_flat = jax.random.uniform(
            k_w, (3 * c_in, d_model), jnp.float32,
            minval=-bound, maxval=bound).astype(jnp.bfloat16)
        self.conv_b = jax.random.uniform(k_b, (1, d_model), jnp.float32,
                                         minval=-bound, maxval=bound)

        # PositionalEncoding table (+ a copy with the conv bias pre-folded), f32.
        self.pe = jnp.asarray(sinusoid_table(max_len, d_model))
        self.pe_plus_bias = self.pe + self.conv_b                 # (max_len, D)

        # Fixed time-feature tables (freq='h': minute unused).  Individual f32
        # copies for the reference; one packed bf16 VMEM-resident table for the kernel.
        self.hour_tab = jnp.asarray(sinusoid_table(24, d_model))
        self.weekday_tab = jnp.asarray(sinusoid_table(7, d_model))
        self.day_tab = jnp.asarray(sinusoid_table(31, d_model))
        self.month_tab = jnp.asarray(sinusoid_table(12, d_model))
        packed = np.zeros((_TIME_ROWS_PAD, d_model), np.float32)
        packed[_HOUR_OFF:_HOUR_OFF + 24] = sinusoid_table(24, d_model)
        packed[_WEEKDAY_OFF:_WEEKDAY_OFF + 7] = sinusoid_table(7, d_model)
        packed[_DAY_OFF:_DAY_OFF + 31] = sinusoid_table(31, d_model)
        packed[_MONTH_OFF:_MONTH_OFF + 12] = sinusoid_table(12, d_model)
        self.time_tab = jnp.asarray(packed).astype(jnp.bfloat16)

    def __call__(self, x: jnp.ndarray, x_timeF: jnp.ndarray) -> jnp.ndarray:
        B, T, C = x.shape
        D = self.d_model
        assert C == self.c_in and T <= self.max_len

        # Generation-aware block sizing: ~4 MiB blocks on 128 MiB-VMEM chips
        # (v5e/v6e), ~2 MiB on v7x's 64 MiB VMEM.
        vmem_cap = _vmem_capacity_bytes()
        block_budget = (4 << 20) if vmem_cap >= (96 << 20) else (2 << 20)
        bB, tT = _pick_tiles(B, T, D, block_budget)
        nT, nB = T // tT, B // bB

        # Host-side prep is tiny (O(B*T*C), O(B*T*4)); the large (B,T,D) streams
        # exist only inside the kernel / as its output.
        f = x_timeF.astype(jnp.int32)
        tidx = jnp.stack([f[..., 3] + _HOUR_OFF,      # hour
                          f[..., 2] + _WEEKDAY_OFF,   # weekday
                          f[..., 1] + _DAY_OFF,       # day
                          f[..., 0] + _MONTH_OFF],    # month
                         axis=-1)                      # (B, T, 4) int32

        out_itemsize = jnp.dtype(self.out_dtype).itemsize
        out_shape = jax.ShapeDtypeStruct((B, T, D), self.out_dtype)
        out_spec = pl.BlockSpec((bB, tT, D), lambda t, b: (b, t, 0))

        # Scoped-VMEM limit from actual double-buffered need (no blanket floor).
        in_block = bB * tT * (D * 4 if self.skip_value_embed else 3 * C * 2)
        streamed = (in_block + bB * tT * D * out_itemsize   # input + output blocks
                    + tT * D * 4                            # pe tile
                    + bB * tT * 4 * 4)                      # time indices
        const = _TIME_ROWS_PAD * D * 2 + (0 if self.skip_value_embed else 3 * C * D * 2)
        need = 2 * streamed + 2 * const + (2 << 20)
        vmem_limit = int(min(max(need, 16 << 20), 48 << 20))
        compiler_params = pltpu.CompilerParams(
            dimension_semantics=("parallel", "parallel"),   # t outer, batch-block inner
            vmem_limit_bytes=vmem_limit,
        )

        if self.skip_value_embed:
            cost = pl.CostEstimate(
                flops=2 * B * T * D * _TIME_ROWS_PAD,
                transcendentals=0,
                bytes_accessed=int(B * T * D * 4 + B * T * D * out_itemsize
                                   + T * D * 4 + B * T * 4 * 4
                                   + _TIME_ROWS_PAD * D * 2))
            return pl.pallas_call(
                _embed_skip_kernel,
                out_shape=out_shape,
                grid=(nT, nB),          # t OUTER: pe tile reused across batch blocks
                in_specs=[
                    pl.BlockSpec((bB, tT, D), lambda t, b: (b, t, 0)),          # x
                    pl.BlockSpec((tT, D), lambda t, b: (t, 0)),                 # pos enc
                    pl.BlockSpec((_TIME_ROWS_PAD, D), lambda t, b: (0, 0)),     # time tables
                    pl.BlockSpec((bB, tT, 4), lambda t, b: (b, t, 0)),          # time idx
                ],
                out_specs=out_spec,
                compiler_params=compiler_params,
                cost_estimate=cost,
            )(x, self.pe[:T], self.time_tab, tidx)

        # Circular 3-tap conv as ONE matmul: pre-shift/concat x on the host into a
        # tiny bf16 (B,T,3C) slab (3C << D), keeping the circular wrap correct
        # across sequence tiles with no in-kernel roll/concat.
        x_cat = jnp.concatenate(
            [jnp.roll(x, 1, axis=1), x, jnp.roll(x, -1, axis=1)],
            axis=-1).astype(jnp.bfloat16)

        cost = pl.CostEstimate(
            flops=2 * B * T * D * (3 * C + _TIME_ROWS_PAD),
            transcendentals=0,
            bytes_accessed=int(B * T * 3 * C * 2 + B * T * D * out_itemsize
                               + T * D * 4 + B * T * 4 * 4
                               + _TIME_ROWS_PAD * D * 2 + 3 * C * D * 2))
        return pl.pallas_call(
            _embed_conv_kernel,
            out_shape=out_shape,
            grid=(nT, nB),              # t OUTER: pe/bias tile reused across batch blocks
            in_specs=[
                pl.BlockSpec((bB, tT, 3 * C), lambda t, b: (b, t, 0)),       # shifted x (bf16)
                pl.BlockSpec((3 * C, D), lambda t, b: (0, 0)),               # conv taps (bf16)
                pl.BlockSpec((tT, D), lambda t, b: (t, 0)),                  # pos enc + bias
                pl.BlockSpec((_TIME_ROWS_PAD, D), lambda t, b: (0, 0)),      # time tables (bf16)
                pl.BlockSpec((bB, tT, 4), lambda t, b: (b, t, 0)),           # time idx
            ],
            out_specs=out_spec,
            compiler_params=compiler_params,
            cost_estimate=cost,
        )(x_cat, self.w_flat, self.pe_plus_bias[:T], self.time_tab, tidx)


# ----------------------------------------------------------------------------
# Pure-JAX reference (mirrors the PyTorch forward semantics, eval mode, f32)
# ----------------------------------------------------------------------------
def reference_forward(module: DataEmbeddingPallas, x, x_timeF):
    B, T, C = x.shape
    idx = x_timeF.astype(jnp.int32)
    time_emb = (jnp.take(module.hour_tab, idx[..., 3], axis=0)
                + jnp.take(module.weekday_tab, idx[..., 2], axis=0)
                + jnp.take(module.day_tab, idx[..., 1], axis=0)
                + jnp.take(module.month_tab, idx[..., 0], axis=0))
    if module.skip_value_embed:
        y = x
    else:
        x_cat = jnp.concatenate(
            [jnp.roll(x, 1, axis=1), x, jnp.roll(x, -1, axis=1)], axis=-1)
        y = jnp.einsum("btk,kd->btd", x_cat,
                       module.w_flat.astype(jnp.float32)) + module.conv_b[None]
    return y + module.pe[:T][None] + time_emb


# ----------------------------------------------------------------------------
if __name__ == "__main__":
    B, T, c_in, d_model = 2, 8, 4, 32

    key = jax.random.PRNGKey(0)
    kx, km, kd, kwd, kh = jax.random.split(key, 5)
    x = jax.random.normal(kx, (B, T, c_in), dtype=jnp.float32)
    x_timeF = jnp.stack(
        [
            jax.random.randint(km, (B, T), 0, 12),   # month
            jax.random.randint(kd, (B, T), 0, 31),   # day
            jax.random.randint(kwd, (B, T), 0, 7),   # weekday
            jax.random.randint(kh, (B, T), 0, 24),   # hour
            jnp.zeros((B, T), dtype=jnp.int32),      # minute (unused, freq='h')
        ],
        axis=-1,
    ).astype(jnp.int32)

    # Kernel matmuls use bf16 operands (MXU-native) with f32 accumulation; the
    # reference is f32, so allow bf16-level rounding.  Real bugs (wrong shift,
    # wrong index offset, wrong tile) show up as O(1) errors and are still caught.
    TOL = dict(rtol=1e-2, atol=3e-2)

    # Conv path (c_in != d_model).  jit folds the x_cat / tidx prep into the
    # same XLA computation as the pallas_call (no extra HBM round-trips).
    mod = DataEmbeddingPallas(d_model=d_model, c_in=c_in, dropout=0.1)
    out = jax.block_until_ready(jax.jit(mod.__call__)(x, x_timeF))
    ref = reference_forward(mod, x, x_timeF)
    np.testing.assert_allclose(np.asarray(out), np.asarray(ref), **TOL)

    # skipValueEmbed path (c_in == d_model)
    mod2 = DataEmbeddingPallas(d_model=d_model, c_in=d_model, dropout=0.1)
    x2 = jax.random.normal(kx, (B, T, d_model), dtype=jnp.float32)
    out2 = jax.block_until_ready(jax.jit(mod2.__call__)(x2, x_timeF))
    ref2 = reference_forward(mod2, x2, x_timeF)
    np.testing.assert_allclose(np.asarray(out2), np.asarray(ref2), **TOL)

    print("KERNEL_OK")
</pallas_src>

<mosaic_0001>
module attributes {stable_mosaic.version = 11 : i64} {
  func.func @_embed_conv_kernel(%arg0: i32, %arg1: i32, %arg2: memref<2x8x12xbf16, #tpu.memory_space<vmem>>, %arg3: memref<12x32xbf16, #tpu.memory_space<vmem>>, %arg4: memref<8x32xf32, #tpu.memory_space<vmem>>, %arg5: memref<128x32xbf16, #tpu.memory_space<vmem>>, %arg6: memref<2x8x4xi32, #tpu.memory_space<vmem>>, %arg7: memref<2x8x32xf32, #tpu.memory_space<vmem>>) attributes {dimension_semantics = [#tpu.dimension_semantics<parallel>, #tpu.dimension_semantics<parallel>], iteration_bounds = array<i64: 1, 1>, scalar_prefetch = 0 : i64, scratch_operands = 0 : i64, tpu.core_type = #tpu.core_type<tc>, window_params = [{transform_indices = @transform_0, window_bounds = array<i64: 2, 8, 12>}, {pipeline_mode = #tpu.pipeline_mode<synchronous>, transform_indices = @transform_1, window_bounds = array<i64: 12, 32>}, {transform_indices = @transform_2, window_bounds = array<i64: 8, 32>}, {pipeline_mode = #tpu.pipeline_mode<synchronous>, transform_indices = @transform_3, window_bounds = array<i64: 128, 32>}, {transform_indices = @transform_4, window_bounds = array<i64: 2, 8, 4>}, {transform_indices = @transform_5, window_bounds = array<i64: 2, 8, 32>}]} {
    %c0 = arith.constant 0 : index
    %c0_0 = arith.constant 0 : index
    %c0_1 = arith.constant 0 : index
    %0 = vector.load %arg2[%c0, %c0_0, %c0_1] : memref<2x8x12xbf16, #tpu.memory_space<vmem>>, vector<2x8x12xbf16>
    %1 = vector.shape_cast %0 : vector<2x8x12xbf16> to vector<16x12xbf16>
    %c0_2 = arith.constant 0 : index
    %c0_3 = arith.constant 0 : index
    %2 = vector.load %arg3[%c0_2, %c0_3] : memref<12x32xbf16, #tpu.memory_space<vmem>>, vector<12x32xbf16>
    %cst = arith.constant dense<0.000000e+00> : vector<16x32xf32>
    %3 = tpu.matmul %1, %2, %cst {dimension_numbers = #tpu.dot_dimension_numbers<[1], [0], [0], [1], [0, 0, 1, 1], [], []>} : vector<16x12xbf16>, vector<12x32xbf16>, vector<16x32xf32> -> vector<16x32xf32>
    %c0_4 = arith.constant 0 : index
    %c0_5 = arith.constant 0 : index
    %c0_6 = arith.constant 0 : index
    %4 = vector.load %arg6[%c0_4, %c0_5, %c0_6] : memref<2x8x4xi32, #tpu.memory_space<vmem>>, vector<2x8x4xi32>
    %5 = vector.shape_cast %4 : vector<2x8x4xi32> to vector<16x4xi32>
    %6 = tpu.iota {dimensions = array<i32: 1>} : vector<16x128xi32>
    %7 = vector.extract_strided_slice %5 {offsets = [0, 0], sizes = [16, 1], strides = [1, 1]} : vector<16x4xi32> to vector<16x1xi32>
    %8 = vector.broadcast %7 : vector<16x1xi32> to vector<16x128xi32>
    %9 = arith.cmpi eq, %6, %8 : vector<16x128xi32>
    %10 = vector.extract_strided_slice %5 {offsets = [0, 1], sizes = [16, 1], strides = [1, 1]} : vector<16x4xi32> to vector<16x1xi32>
    %11 = vector.broadcast %10 : vector<16x1xi32> to vector<16x128xi32>
    %12 = arith.cmpi eq, %6, %11 : vector<16x128xi32>
    %13 = arith.ori %9, %12 : vector<16x128xi1>
    %14 = vector.extract_strided_slice %5 {offsets = [0, 2], sizes = [16, 1], strides = [1, 1]} : vector<16x4xi32> to vector<16x1xi32>
    %15 = vector.broadcast %14 : vector<16x1xi32> to vector<16x128xi32>
    %16 = arith.cmpi eq, %6, %15 : vector<16x128xi32>
    %17 = arith.ori %13, %16 : vector<16x128xi1>
    %18 = vector.extract_strided_slice %5 {offsets = [0, 3], sizes = [16, 1], strides = [1, 1]} : vector<16x4xi32> to vector<16x1xi32>
    %19 = vector.broadcast %18 : vector<16x1xi32> to vector<16x128xi32>
    %20 = arith.cmpi eq, %6, %19 : vector<16x128xi32>
    %21 = arith.ori %17, %20 : vector<16x128xi1>
    %22 = arith.extui %21 : vector<16x128xi1> to vector<16x128xi32>
    %23 = arith.sitofp %22 : vector<16x128xi32> to vector<16x128xf32>
    %24 = arith.truncf %23 : vector<16x128xf32> to vector<16x128xbf16>
    %c0_7 = arith.constant 0 : index
    %c0_8 = arith.constant 0 : index
    %25 = vector.load %arg5[%c0_7, %c0_8] : memref<128x32xbf16, #tpu.memory_space<vmem>>, vector<128x32xbf16>
    %cst_9 = arith.constant dense<0.000000e+00> : vector<16x32xf32>
    %26 = tpu.matmul %24, %25, %cst_9 {dimension_numbers = #tpu.dot_dimension_numbers<[1], [0], [0], [1], [0, 0, 1, 1], [], []>} : vector<16x128xbf16>, vector<128x32xbf16>, vector<16x32xf32> -> vector<16x32xf32>
    %27 = arith.addf %3, %26 : vector<16x32xf32>
    %28 = vector.shape_cast %27 : vector<16x32xf32> to vector<2x8x32xf32>
    %c0_10 = arith.constant 0 : index
    %c0_11 = arith.constant 0 : index
    %29 = vector.load %arg4[%c0_10, %c0_11] : memref<8x32xf32, #tpu.memory_space<vmem>>, vector<8x32xf32>
    %30 = vector.shape_cast %29 : vector<8x32xf32> to vector<1x8x32xf32>
    %31 = vector.broadcast %30 : vector<1x8x32xf32> to vector<2x8x32xf32>
    %32 = arith.addf %28, %31 : vector<2x8x32xf32>
    %c0_12 = arith.constant 0 : index
    %c0_13 = arith.constant 0 : index
    %c0_14 = arith.constant 0 : index
    %33 = vector.load %arg7[%c0_12, %c0_13, %c0_14] : memref<2x8x32xf32, #tpu.memory_space<vmem>>, vector<2x8x32xf32>
    tpu.vector_store %arg7[%c0_12, %c0_13, %c0_14], %32 {strides = array<i32>} : memref<2x8x32xf32, #tpu.memory_space<vmem>>, vector<2x8x32xf32>,
    return
  }
  func.func @transform_0(%arg0: i32, %arg1: i32) -> (i32, i32, i32) {
    %c0_i32 = arith.constant 0 : i32
    %c0_i32_0 = arith.constant 0 : i32
    return %arg1, %arg0, %c0_i32 : i32, i32, i32
  }
  func.func @transform_1(%arg0: i32, %arg1: i32) -> (i32, i32) {
    %c0_i32 = arith.constant 0 : i32
    %c0_i32_0 = arith.constant 0 : i32
    %c0_i32_1 = arith.constant 0 : i32
    return %c0_i32, %c0_i32_0 : i32, i32
  }
  func.func @transform_2(%arg0: i32, %arg1: i32) -> (i32, i32) {
    %c0_i32 = arith.constant 0 : i32
    %c0_i32_0 = arith.constant 0 : i32
    return %arg0, %c0_i32 : i32, i32
  }
  func.func @transform_3(%arg0: i32, %arg1: i32) -> (i32, i32) {
    %c0_i32 = arith.constant 0 : i32
    %c0_i32_0 = arith.constant 0 : i32
    %c0_i32_1 = arith.constant 0 : i32
    return %c0_i32, %c0_i32_0 : i32, i32
  }
  func.func @transform_4(%arg0: i32, %arg1: i32) -> (i32, i32, i32) {
    %c0_i32 = arith.constant 0 : i32
    %c0_i32_0 = arith.constant 0 : i32
    return %arg1, %arg0, %c0_i32 : i32, i32, i32
  }
  func.func @transform_5(%arg0: i32, %arg1: i32) -> (i32, i32, i32) {
    %c0_i32 = arith.constant 0 : i32
    %c0_i32_0 = arith.constant 0 : i32
    return %arg1, %arg0, %c0_i32 : i32, i32, i32
  }
}

</mosaic_0001>

<llo_original>
// kernel: a_call__.1
$region0: #{a_call__.1}
  #allocation0 [shape = 'u32[]', space=smem, size = 0x4, offset = 0x4, fixed_abs, tag = 'smem constant byte address 0x4 - core index']
  #allocation1 [shape = 'u32[144,128]{1,0:T(1,128)}', space=vmem, size = 0x12000, scoped, tag = 'internal scratch']
  %s0 = inlined_call_operand.vmem [shape: bf16[2,8,12], index: 0, kind: input, shape index: {}]
  %s1 = inlined_call_operand.vmem [shape: bf16[12,32], index: 1, kind: input, shape index: {}]
  %s2 = inlined_call_operand.vmem [shape: f32[8,32], index: 2, kind: input, shape index: {}]
  %s3 = inlined_call_operand.vmem [shape: bf16[128,32], index: 3, kind: input, shape index: {}]
  %s4 = inlined_call_operand.vmem [shape: s32[2,8,4], index: 4, kind: input, shape index: {}]
  %s5 = inlined_call_operand.hbm [shape: f32[2,8,32], index: 5, kind: output, shape index: {}]
  %s6 = sld [smem:[#allocation0]]
  $region30: #{a_call__.1} parent=0
    _
  %s8 = ssub.s32 1, %s6
  %s9 = scalar_select 0, %s8, %s6
  $region1: #{a_call__.1} parent=0
    #allocation2 [shape = 'u8[8192]{0}', space=vmem, size = 0x2000, scoped, tag = 'output window, operand 0, single buffered']
    #allocation3 [shape = 's32[1]{0}', space=sflag, size = 0x4, scoped, tag = 'scoped memory for a_call__.1']
    %10 = vsyncpa [#allocation3], 0
    // Predicated region
    $region2: #{a_call__.1} parent=1 // pred_check
      _
    $region3: #{a_call__.1} parent=1 // pred_check_branch
      %12 = sbr.rel (0) target = $region5
    $region4: #{a_call__.1} parent=1 // pred_region
      _
    $region5: #{a_call__.1} parent=1 // pred_fallthru
      _
    // Predicated region
    $region6: #{a_call__.1} parent=1 // pred_check
      _
    $region7: #{a_call__.1} parent=1 // pred_check_branch
      %14 = sbr.rel (0) target = $region9
    $region8: #{a_call__.1} parent=1 // pred_region
      _
    $region9: #{a_call__.1} parent=1 // pred_fallthru
      _
    // Predicated region
    $region10: #{a_call__.1} parent=1 // pred_check
      _
    $region11: #{a_call__.1} parent=1 // pred_check_branch
      %16 = sbr.rel (0) target = $region13
    $region12: #{a_call__.1} parent=1 // pred_region
      _
    $region13: #{a_call__.1} parent=1 // pred_fallthru
      _
    // Predicated region
    $region14: #{a_call__.1} parent=1 // pred_check
      _
    $region15: #{a_call__.1} parent=1 // pred_check_branch
      %18 = sbr.rel (0) target = $region17
    $region16: #{a_call__.1} parent=1 // pred_region
      _
    $region17: #{a_call__.1} parent=1 // pred_fallthru
      _
    // Predicated region
    $region18: #{a_call__.1} parent=1 // pred_check
      _
    $region19: #{a_call__.1} parent=1 // pred_check_branch
      %20 = sbr.rel (0) target = $region21
    $region20: #{a_call__.1} parent=1 // pred_region
      _
    $region21: #{a_call__.1} parent=1 // pred_fallthru
      _
    %v22 = vld [vmem:[%s0] sm:$0xf]
    %v23 = vld [vmem:[%s0 + $0x4] sm:$0xf]
    %v24 = vld [vmem:[%s1] sm:$0xf]
    %v25 = vld [vmem:[%s1 + $0x4] sm:$0x3]
    %v26 = vld [vmem:[%s4] sm:$0xff]
    %v27 = vld [vmem:[%s4 + $0x8] sm:$0xff]
    %v28 = vlaneseq
    %v29 = vand.u32 %v28, 127
    %30 = vset.pattern.permute.xlu0 0
    %31 = vperm.xlu0 %30, %v26
    %v32 = vpop.permute.xlu0 %31
    %33 = vset.pattern.permute.xlu0 0
    %34 = vperm.xlu0 %33, %v27
    %v35 = vpop.permute.xlu0 %34
    %vm36 = vcmp.eq.s32.totalorder %v29, %v32
    %vm37 = vcmp.eq.s32.totalorder %v29, %v35
    %38 = vset.pattern.permute.xlu0 1
    %39 = vperm.xlu0 %38, %v26
    %v40 = vpop.permute.xlu0 %39
    %41 = vset.pattern.permute.xlu0 1
    %42 = vperm.xlu0 %41, %v27
    %v43 = vpop.permute.xlu0 %42
    %vm44 = vcmp.eq.s32.totalorder %v29, %v40
    %vm45 = vcmp.eq.s32.totalorder %v29, %v43
    %vm46 = vmor %vm36, %vm44
    %vm47 = vmor %vm37, %vm45
    %48 = vset.pattern.permute.xlu0 2
    %49 = vperm.xlu0 %48, %v26
    %v50 = vpop.permute.xlu0 %49
    %51 = vset.pattern.permute.xlu0 2
    %52 = vperm.xlu0 %51, %v27
    %v53 = vpop.permute.xlu0 %52
    %vm54 = vcmp.eq.s32.totalorder %v29, %v50
    %vm55 = vcmp.eq.s32.totalorder %v29, %v53
    %vm56 = vmor %vm46, %vm54
    %vm57 = vmor %vm47, %vm55
    %58 = vset.pattern.permute.xlu0 3
    %59 = vperm.xlu0 %58, %v26
    %v60 = vpop.permute.xlu0 %59
    %61 = vset.pattern.permute.xlu0 3
    %62 = vperm.xlu0 %61, %v27
    %v63 = vpop.permute.xlu0 %62
    %vm64 = vcmp.eq.s32.totalorder %v29, %v60
    %vm65 = vcmp.eq.s32.totalorder %v29, %v63
    %vm66 = vmor %vm56, %vm64
    %vm67 = vmor %vm57, %vm65
    %v68 = vsel %vm66, 1, 0
    %v69 = vsel %vm67, 1, 0
    %v70 = vcvt.s32.f32 %v68
    %v71 = vcvt.s32.f32 %v69
    %v72 = vpack.c.bf16 %v71, %v70
    %v73 = vld [vmem:[%s3] sm:$0xf]
    %v74 = vld [vmem:[%s3 + $0x4] sm:$0xf]
    %v75 = vld [vmem:[%s3 + $0x8] sm:$0xf]
    %v76 = vld [vmem:[%s3 + $0xc] sm:$0xf]
    %v77 = vld [vmem:[%s3 + $0x10] sm:$0xf]
    %v78 = vld [vmem:[%s3 + $0x14] sm:$0xf]
    %v79 = vld [vmem:[%s3 + $0x18] sm:$0xf]
    %v80 = vld [vmem:[%s3 + $0x1c] sm:$0xf]
    %v81 = vld [vmem:[%s3 + $0x20] sm:$0xf]
    %v82 = vld [vmem:[%s3 + $0x24] sm:$0xf]
    %v83 = vld [vmem:[%s3 + $0x28] sm:$0xf]
    %v84 = vld [vmem:[%s3 + $0x2c] sm:$0xf]
    %v85 = vld [vmem:[%s3 + $0x30] sm:$0xf]
    %v86 = vld [vmem:[%s3 + $0x34] sm:$0xf]
    %v87 = vld [vmem:[%s3 + $0x38] sm:$0xf]
    %v88 = vld [vmem:[%s3 + $0x3c] sm:$0xf]
    %v105 = vunpack.c.l.b16 %v73
    %v106 = vunpack.c.l.b16 %v74
    %v107 = vunpack.c.l.b16 %v75
    %v108 = vunpack.c.l.b16 %v76
    %v109 = vunpack.c.l.b16 %v77
    %v110 = vunpack.c.l.b16 %v78
    %v111 = vunpack.c.l.b16 %v79
    %v112 = vunpack.c.l.b16 %v80
    %v113 = vunpack.c.l.b16 %v81
    %v114 = vunpack.c.l.b16 %v82
    %v115 = vunpack.c.l.b16 %v83
    %v116 = vunpack.c.l.b16 %v84
    %v117 = vunpack.c.l.b16 %v85
    %v118 = vunpack.c.l.b16 %v86
    %v119 = vunpack.c.l.b16 %v87
    %v120 = vunpack.c.l.b16 %v88
    %v121 = vpack.c.b16 %v106, %v105
    %v122 = vpack.c.b16 %v108, %v107
    %v123 = vpack.c.b16 %v110, %v109
    %v124 = vpack.c.b16 %v112, %v111
    %v125 = vpack.c.b16 %v114, %v113
    %v126 = vpack.c.b16 %v116, %v115
    %v127 = vpack.c.b16 %v118, %v117
    %v128 = vpack.c.b16 %v120, %v119
    %137 = vmatprep.subr.bf16.mxu0 0
    %138 = vmatpush1.bf16.msra.mxu0 %v121
    %139 = vmatprep.subr.bf16.mxu0 0
    %140 = vmatpush1.bf16.msra.mxu0 %v122
    %141 = vmatprep.subr.bf16.mxu0 0
    %142 = vmatpush1.bf16.msra.mxu0 %v123
    %143 = vmatprep.subr.bf16.mxu0 0
    %144 = vmatpush1.bf16.msra.mxu0 %v124
    %145 = vmatprep.subr.bf16.mxu0 0
    %146 = vmatpush1.bf16.msra.mxu0 %v125
    %147 = vmatprep.subr.bf16.mxu0 0
    %148 = vmatpush1.bf16.msra.mxu0 %v126
    %149 = vmatprep.subr.bf16.mxu0 0
    %150 = vmatpush1.bf16.msra.mxu0 %v127
    %151 = vmatprep.subr.bf16.mxu0 0
    %152 = vmatpush1.bf16.msra.mxu0 %v128
    %153 = vmatprep.subr.bf16.mxu0 0
    %154 = vmatpush1.bf16.msra.mxu0 0
    %155 = vmatprep.subr.bf16.mxu0 0
    %156 = vmatpush1.bf16.msra.mxu0 0
    %157 = vmatprep.subr.bf16.mxu0 0
    %158 = vmatpush1.bf16.msra.mxu0 0
    %159 = vmatprep.subr.bf16.mxu0 0
    %160 = vmatpush1.bf16.msra.mxu0 0
    %161 = vmatprep.subr.bf16.mxu0 0
    %162 = vmatpush1.bf16.msra.mxu0 0
    %163 = vmatprep.subr.bf16.mxu0 0
    %164 = vmatpush1.bf16.msra.mxu0 0
    %165 = vmatprep.subr.bf16.mxu0 0
    %166 = vmatpush1.bf16.msra.mxu0 0
    %167 = vmatprep.subr.bf16.mxu0 0
    %168 = vmatpush1.bf16.msra.mxu0 0
    %169 = vmatprep.mubr.bf16.mxu0 0
    %170 = vmatmul.mubr.bf16.gmra.mrb[0].mxu0 %v72
    %v171 = vpop.f32.mrb[0].mxu0
    %v172 = vadd.f32 0.0, %v171
    %v173 = vpop.f32.mrb[0].mxu0
    %v174 = vpop.f32.mrb[0].mxu0
    %v175 = vadd.f32 0.0, %v174
    %v176 = vpop.f32.mrb[0].mxu0
    %177 = vdwg.mxu0
    %v180 = vunpack.c.l.b16 %v22
    %v181 = vunpack.c.l.b16 %v23
    %v182 = vpack.c.b16 %v181, %v180
    %v185 = vunpack.c.l.b16 %v24
    %v186 = vunpack.c.l.b16 %v25
    %v187 = vpack.c.b16 %v186, %v185
    %vm188 = vcmask 97280
    %v190 = vsel %vm188, %v182, 0
    %vm192 = vcmask 1045504
    %v194 = vsel %vm192, %v187, 0
    %196 = vmatprep.subr.bf16.mxu0 0
    %197 = vmatpush1.bf16.msra.mxu0 %v194
    %198 = vmatprep.subr.bf16.mxu0 0
    %199 = vmatpush1.bf16.msra.mxu0 0
    %200 = vmatprep.subr.bf16.mxu0 0
    %201 = vmatpush1.bf16.msra.mxu0 0
    %202 = vmatprep.subr.bf16.mxu0 0
    %203 = vmatpush1.bf16.msra.mxu0 0
    %204 = vmatprep.subr.bf16.mxu0 0
    %205 = vmatpush1.bf16.msra.mxu0 0
    %206 = vmatprep.subr.bf16.mxu0 0
    %207 = vmatpush1.bf16.msra.mxu0 0
    %208 = vmatprep.subr.bf16.mxu0 0
    %209 = vmatpush1.bf16.msra.mxu0 0
    %210 = vmatprep.subr.bf16.mxu0 0
    %211 = vmatpush1.bf16.msra.mxu0 0
    %212 = vmatprep.subr.bf16.mxu0 0
    %213 = vmatpush1.bf16.msra.mxu0 0
    %214 = vmatprep.subr.bf16.mxu0 0
    %215 = vmatpush1.bf16.msra.mxu0 0
    %216 = vmatprep.subr.bf16.mxu0 0
    %217 = vmatpush1.bf16.msra.mxu0 0
    %218 = vmatprep.subr.bf16.mxu0 0
    %219 = vmatpush1.bf16.msra.mxu0 0
    %220 = vmatprep.subr.bf16.mxu0 0
    %221 = vmatpush1.bf16.msra.mxu0 0
    %222 = vmatprep.subr.bf16.mxu0 0
    %223 = vmatpush1.bf16.msra.mxu0 0
    %224 = vmatprep.subr.bf16.mxu0 0
    %225 = vmatpush1.bf16.msra.mxu0 0
    %226 = vmatprep.subr.bf16.mxu0 0
    %227 = vmatpush1.bf16.msra.mxu0 0
    %228 = vmatprep.mubr.bf16.mxu0 0
    %229 = vmatmul.mubr.bf16.gmra.mrb[0].mxu0 %v190
    %v230 = vpop.f32.mrb[0].mxu0
    %v231 = vadd.f32 %v172, %v230
    %v232 = vpop.f32.mrb[0].mxu0
    %v233 = vpop.f32.mrb[0].mxu0
    %v234 = vadd.f32 %v175, %v233
    %v235 = vpop.f32.mrb[0].mxu0
    %236 = vdwg.mxu0
    %v237 = vld [vmem:[%s2] sm:$0xff]
    %v238 = vadd.f32 %v231, %v237
    %v239 = vadd.f32 %v234, %v237
    %vm240 = vcmask 261120
    %241 = vst.msk [vmem:[#allocation2] sm:$0xff] %vm240, %v238
    %242 = vst.msk [vmem:[#allocation2 + $0x8] sm:$0xff] %vm240, %v239
    // Predicated region
    $region22: #{a_call__.1} parent=1 // pred_check
      _
    $region23: #{a_call__.1} parent=1 // pred_check_branch
      %244 = sbr.rel (0) target = $region25
    $region24: #{a_call__.1} parent=1 // pred_region
      %s246 = ssub.s32 256, 256
      %247 = vsyncadd [#allocation3], %s246
      %s248 = sshll.u32 [#allocation2], 4
      %s249 = int_to_ptr.vmem [resolvable:$true] %s248
      %254 = dma.vmem_to_hbm [thread:$0]  %s249, 256, %s5, [#allocation3], 128, 128, 8
    $region25: #{a_call__.1} parent=1 // pred_fallthru
      _
    // Predicated region
    $region26: #{a_call__.1} parent=1 // pred_check
      _
    $region27: #{a_call__.1} parent=1 // pred_check_branch
      %256 = sbr.rel (0) target = $region29
    $region28: #{a_call__.1} parent=1 // pred_region
      %257 = dma.done [#allocation3], 256
    $region29: #{a_call__.1} parent=1 // pred_fallthru
      _
    %258 = vsyncpa [#allocation3], 1

</llo_original>
